<compile_context>
chip_gen: v5e
topology: v5e:2x2
jax: 0.10.0
libtpu: 0.0.40
codegen_flags: <defaults>
</compile_context>

<pallas_src>
import functools

import jax
import jax.numpy as jnp
from jax import lax
from jax.experimental import pallas as pl
from jax.experimental.pallas import tpu as pltpu


# Scoped-VMEM budget: safe under v7x's 64 MiB/TC physical VMEM; raise toward
# ~96 MiB on v5e/v6e if TQ is grown to 512 at large N.
_VMEM_LIMIT_BYTES = 48 * 1024 * 1024


def _qkv_proj_kernel(x_ref, w_ref, b_ref, q_ref, k_ref, v_ref, *, cqp):
    """Fused 1x1-conv projections on one NCHW spatial tile.

    x_ref : (C, TQ)          f32
    w_ref : (2*Cqp + C, C)   bf16   -- [Wq_pad; Wk_pad; Wv] stacked
    b_ref : (2*Cqp + C, 1)   f32
    q_ref : (Cqp, TQ) bf16, k_ref : (Cqp, TQ) bf16, v_ref : (C, TQ) bf16
    All outputs are channels-first (lane-dense in TQ); no transposes here.
    """
    x = x_ref[...].astype(jnp.bfloat16)                                   # (C, TQ)
    y = jnp.dot(w_ref[...], x, preferred_element_type=jnp.float32) + b_ref[...]
    q_ref[...] = y[:cqp].astype(jnp.bfloat16)                             # (Cqp, TQ)
    k_ref[...] = y[cqp:2 * cqp].astype(jnp.bfloat16)                      # (Cqp, TQ)
    v_ref[...] = y[2 * cqp:].astype(jnp.bfloat16)                         # (C, TQ)


def _attention_kernel(k_ref, q_ref, v_ref, x_ref, gamma_ref, out_ref, attn_ref):
    """One (TQ, N) row-slab of the attention map + matching (C, TQ) output slab.

    k_ref : (Cqp, TQ) bf16  -- this tile's K columns (channels-first)
    q_ref : (Cqp, N)  bf16  -- full Q, VMEM-resident across row tiles of a batch
    v_ref : (C, N)    bf16  -- full V, VMEM-resident, channels-first
    x_ref : (C, TQ)   f32   -- residual input tile (NCHW layout)
    gamma_ref : (1, 1) f32 in SMEM
    out_ref : (C, TQ) f32       attn_ref : (TQ, N) bf16 (or f32 if requested)
    """
    # logits: s[t, n] = sum_c K[c, t] * Q[c, n]  (== S[n, t] of the PyTorch code)
    # TN dot: contract dim 0 of both operands.
    s = lax.dot_general(k_ref[...], q_ref[...], (((0,), (0,)), ((), ())),
                        preferred_element_type=jnp.float32)               # (TQ, N)
    # Full-axis softmax in f32 (correct on all generations).
    # TODO(synk): on v6e/v7x the EUP exp slot is likely the binding unit at small
    # channel counts; computing exp in bf16 after the f32 max-subtraction would
    # roughly double EUP throughput there (do NOT do this on v5e).
    s_max = jnp.max(s, axis=-1, keepdims=True)
    e = jnp.exp(s - s_max)
    inv = pl.reciprocal(jnp.sum(e, axis=-1, keepdims=True), approx=True)  # EUP vrcp
    attn = e * inv                                                        # (TQ, N) f32
    attn_ref[...] = attn.astype(attn_ref.dtype)

    # o[c, t] = sum_n V[c, n] * attn[t, n]  (== bmm(V, attn_T) for these rows)
    # NT dot: contract last dim of both operands -> (C, TQ) directly, no transpose.
    o = lax.dot_general(v_ref[...], attn.astype(jnp.bfloat16),
                        (((1,), (1,)), ((), ())),
                        preferred_element_type=jnp.float32)               # (C, TQ)
    out_ref[...] = x_ref[...] + gamma_ref[0, 0] * o


def self_attention(x_nchw, wq, bq, wk, bk, wv, bv, gamma, *,
                   tq=None, attn_dtype=jnp.bfloat16):
    """x_nchw: (B, C, H, W) f32.

    Returns (out (B,C,H,W) f32, attention_map (B,N,N) attn_dtype).
    attn_dtype defaults to bf16 (halves the dominant O(N^2) HBM writeback);
    pass jnp.float32 if downstream consumers need full precision.
    """
    B, C, H, W = x_nchw.shape
    N = H * W
    Cq = wq.shape[0]

    # Row-tile size over the spatial axis (multiple of 128 keeps stores lane-dense).
    # v5e/v6e: 256-512 (raise _VMEM_LIMIT_BYTES accordingly); v7x: <= 256.
    if tq is None:
        tq = 256 if N % 256 == 0 else (128 if N % 128 == 0 else N)
    assert N % tq == 0, "spatial size must be divisible by the row-tile size"
    n_row_tiles = N // tq

    # Pad query/key channels to a multiple of 16 (bf16 sublane packing); zero-padded
    # channels contribute exactly 0 to the logits.
    Cqp = ((Cq + 15) // 16) * 16
    pad = Cqp - Cq
    wq_p = jnp.pad(wq, ((0, pad), (0, 0)))
    wk_p = jnp.pad(wk, ((0, pad), (0, 0)))
    bq_p = jnp.pad(bq, (0, pad))
    bk_p = jnp.pad(bk, (0, pad))
    # Fuse the three projection weights into one well-shaped matmul.
    w_all = jnp.concatenate([wq_p, wk_p, wv], axis=0).astype(jnp.bfloat16)  # (Ctot, C)
    b_all = jnp.concatenate([bq_p, bk_p, bv], axis=0).reshape(-1, 1).astype(jnp.float32)
    Ctot = 2 * Cqp + C

    x_flat = x_nchw.reshape(B, C, N)      # NCHW, spatial flattened (no HBM transpose)

    cparams = pltpu.CompilerParams(
        dimension_semantics=("parallel", "parallel"),
        vmem_limit_bytes=_VMEM_LIMIT_BYTES)

    # ---- Pass 1: fused Q/K/V projections (1x1 convs), row-tiled over spatial ----
    # TODO(synk): for small N (<= ~512) the projection could be fused into the
    # attention pallas_call (compute Q/V once per batch under pl.when(r == 0)).
    q_cf, k_cf, v_cf = pl.pallas_call(
        functools.partial(_qkv_proj_kernel, cqp=Cqp),
        out_shape=(
            jax.ShapeDtypeStruct((B, Cqp, N), jnp.bfloat16),   # Q, channels-first
            jax.ShapeDtypeStruct((B, Cqp, N), jnp.bfloat16),   # K, channels-first
            jax.ShapeDtypeStruct((B, C, N), jnp.bfloat16),     # V, channels-first
        ),
        grid=(B, n_row_tiles),
        in_specs=[
            pl.BlockSpec((None, C, tq), lambda b, r: (b, 0, r)),   # x tile (NCHW)
            pl.BlockSpec((Ctot, C), lambda b, r: (0, 0)),          # fused weights
            pl.BlockSpec((Ctot, 1), lambda b, r: (0, 0)),          # fused biases
        ],
        out_specs=(
            pl.BlockSpec((None, Cqp, tq), lambda b, r: (b, 0, r)),
            pl.BlockSpec((None, Cqp, tq), lambda b, r: (b, 0, r)),
            pl.BlockSpec((None, C, tq), lambda b, r: (b, 0, r)),
        ),
        compiler_params=cparams,
    )(x_flat, w_all, b_all)

    # ---- Pass 2: attention map + output, row-tiled with Q/V resident per batch ----
    out_cn, attn = pl.pallas_call(
        _attention_kernel,
        out_shape=(
            jax.ShapeDtypeStruct((B, C, N), jnp.float32),      # out, NCHW layout
            jax.ShapeDtypeStruct((B, N, N), attn_dtype),       # attention map
        ),
        grid=(B, n_row_tiles),
        in_specs=[
            pl.BlockSpec((None, Cqp, tq), lambda b, r: (b, 0, r)),   # K tile
            pl.BlockSpec((None, Cqp, N), lambda b, r: (b, 0, 0)),    # Q (resident)
            pl.BlockSpec((None, C, N), lambda b, r: (b, 0, 0)),      # V (resident)
            pl.BlockSpec((None, C, tq), lambda b, r: (b, 0, r)),     # x tile (residual)
            pl.BlockSpec(memory_space=pltpu.MemorySpace.SMEM),       # gamma scalar
        ],
        out_specs=(
            pl.BlockSpec((None, C, tq), lambda b, r: (b, 0, r)),     # out (lane-dense TQ)
            pl.BlockSpec((None, tq, N), lambda b, r: (b, r, 0)),     # attn (lane-dense N)
        ),
        compiler_params=cparams,
    )(k_cf, q_cf, v_cf, x_flat, gamma.reshape(1, 1).astype(jnp.float32))

    return out_cn.reshape(B, C, H, W), attn


def ref_forward(x, wq, bq, wk, bk, wv, bv, gamma):
    """Pure-JAX f32 transcription of the PyTorch forward (for validation)."""
    B, C, H, W = x.shape
    N = H * W
    xf = x.reshape(B, C, N)
    q = jnp.einsum('oc,bcn->bon', wq, xf) + bq[None, :, None]
    k = jnp.einsum('oc,bcn->bon', wk, xf) + bk[None, :, None]
    v = jnp.einsum('oc,bcn->bon', wv, xf) + bv[None, :, None]
    proj_query = jnp.transpose(q, (0, 2, 1))                   # (B, N, Cq)
    S = jnp.einsum('bic,bcj->bij', proj_query, k)              # (B, N, N)
    attn_T = jax.nn.softmax(S, axis=-2)
    attn = jnp.transpose(attn_T, (0, 2, 1))
    o = jnp.einsum('bcm,bmn->bcn', v, attn_T).reshape(B, C, H, W)
    out = x + gamma * o
    return out, attn


if __name__ == "__main__":
    B, C, H, W = 2, 64, 16, 16          # in_dim = 64 -> query/key channels = 8
    Cq = C // 8
    N = H * W
    key = jax.random.PRNGKey(0)
    k_x, k_wq, k_bq, k_wk, k_bk, k_wv, k_bv = jax.random.split(key, 7)

    x = jax.random.normal(k_x, (B, C, H, W), dtype=jnp.float32)
    # 1x1 conv weights (out_ch, in_ch); kernel-size-1 spatial dims folded away.
    wq = jax.random.normal(k_wq, (Cq, C), dtype=jnp.float32) * 0.1
    bq = jax.random.normal(k_bq, (Cq,), dtype=jnp.float32) * 0.1
    wk = jax.random.normal(k_wk, (Cq, C), dtype=jnp.float32) * 0.1
    bk = jax.random.normal(k_bk, (Cq,), dtype=jnp.float32) * 0.1
    wv = jax.random.normal(k_wv, (C, C), dtype=jnp.float32) * 0.1
    bv = jax.random.normal(k_bv, (C,), dtype=jnp.float32) * 0.1
    # NOTE: PyTorch initializes gamma to 0 (out == x); use a nonzero value so the
    # residual-attention path is actually exercised.
    gamma = jnp.array([0.5], dtype=jnp.float32)

    out, attn = self_attention(x, wq, bq, wk, bk, wv, bv, gamma)
    out = jax.block_until_ready(out)
    attn = jax.block_until_ready(attn)

    out_ref, attn_ref = ref_forward(x, wq, bq, wk, bk, wv, bv, gamma)

    assert out.shape == (B, C, H, W) and attn.shape == (B, N, N)
    attn_f32 = attn.astype(jnp.float32)
    # Rows of the returned attention map are softmax distributions (bf16 attn map
    # + approx reciprocal -> ~1e-2 tolerance on the row sums).
    assert jnp.allclose(jnp.sum(attn_f32, axis=-1), 1.0, atol=1e-2)
    # bf16 MXU inputs (f32 accumulation) and bf16 attention-map storage -> compare
    # against the pure-f32 reference with bf16-appropriate tolerances.
    assert jnp.allclose(attn_f32, attn_ref, atol=2e-2)
    assert jnp.allclose(out, out_ref, atol=5e-2, rtol=5e-2)

    print("KERNEL_OK")
</pallas_src>

<mosaic_0001>
module attributes {stable_mosaic.version = 11 : i64} {
  func.func @_qkv_proj_kernel(%arg0: i32, %arg1: i32, %arg2: memref<1x64x256xf32, #tpu.memory_space<vmem>>, %arg3: memref<96x64xbf16, #tpu.memory_space<vmem>>, %arg4: memref<96x1xf32, #tpu.memory_space<vmem>>, %arg5: memref<1x16x256xbf16, #tpu.memory_space<vmem>>, %arg6: memref<1x16x256xbf16, #tpu.memory_space<vmem>>, %arg7: memref<1x64x256xbf16, #tpu.memory_space<vmem>>) attributes {dimension_semantics = [#tpu.dimension_semantics<parallel>, #tpu.dimension_semantics<parallel>], iteration_bounds = array<i64: 2, 1>, scalar_prefetch = 0 : i64, scratch_operands = 0 : i64, tpu.core_type = #tpu.core_type<tc>, window_params = [{transform_indices = @transform_0, window_bounds = array<i64: 1, 64, 256>}, {pipeline_mode = #tpu.pipeline_mode<synchronous>, transform_indices = @transform_1, window_bounds = array<i64: 96, 64>}, {pipeline_mode = #tpu.pipeline_mode<synchronous>, transform_indices = @transform_2, window_bounds = array<i64: 96, 1>}, {transform_indices = @transform_3, window_bounds = array<i64: 1, 16, 256>}, {transform_indices = @transform_4, window_bounds = array<i64: 1, 16, 256>}, {transform_indices = @transform_5, window_bounds = array<i64: 1, 64, 256>}]} {
    %c0 = arith.constant 0 : index
    %c0_0 = arith.constant 0 : index
    %c0_1 = arith.constant 0 : index
    %0 = vector.load %arg2[%c0, %c0_0, %c0_1] : memref<1x64x256xf32, #tpu.memory_space<vmem>>, vector<1x64x256xf32>
    %1 = vector.shape_cast %0 : vector<1x64x256xf32> to vector<64x256xf32>
    %2 = arith.truncf %1 : vector<64x256xf32> to vector<64x256xbf16>
    %c0_2 = arith.constant 0 : index
    %c0_3 = arith.constant 0 : index
    %3 = vector.load %arg3[%c0_2, %c0_3] : memref<96x64xbf16, #tpu.memory_space<vmem>>, vector<96x64xbf16>
    %cst = arith.constant dense<0.000000e+00> : vector<96x256xf32>
    %4 = tpu.matmul %3, %2, %cst {dimension_numbers = #tpu.dot_dimension_numbers<[1], [0], [0], [1], [0, 0, 1, 1], [], []>} : vector<96x64xbf16>, vector<64x256xbf16>, vector<96x256xf32> -> vector<96x256xf32>
    %c0_4 = arith.constant 0 : index
    %c0_5 = arith.constant 0 : index
    %5 = vector.load %arg4[%c0_4, %c0_5] : memref<96x1xf32, #tpu.memory_space<vmem>>, vector<96x1xf32>
    %6 = vector.broadcast %5 : vector<96x1xf32> to vector<96x256xf32>
    %7 = arith.addf %4, %6 : vector<96x256xf32>
    %8 = vector.extract_strided_slice %7 {offsets = [0, 0], sizes = [16, 256], strides = [1, 1]} : vector<96x256xf32> to vector<16x256xf32>
    %9 = arith.truncf %8 : vector<16x256xf32> to vector<16x256xbf16>
    %c0_6 = arith.constant 0 : index
    %c0_7 = arith.constant 0 : index
    %c0_8 = arith.constant 0 : index
    %10 = vector.load %arg5[%c0_6, %c0_7, %c0_8] : memref<1x16x256xbf16, #tpu.memory_space<vmem>>, vector<1x16x256xbf16>
    %11 = vector.shape_cast %10 : vector<1x16x256xbf16> to vector<16x256xbf16>
    %12 = vector.shape_cast %9 : vector<16x256xbf16> to vector<1x16x256xbf16>
    tpu.vector_store %arg5[%c0_6, %c0_7, %c0_8], %12 {strides = array<i32>} : memref<1x16x256xbf16, #tpu.memory_space<vmem>>, vector<1x16x256xbf16>,
    %13 = vector.extract_strided_slice %7 {offsets = [16, 0], sizes = [16, 256], strides = [1, 1]} : vector<96x256xf32> to vector<16x256xf32>
    %14 = arith.truncf %13 : vector<16x256xf32> to vector<16x256xbf16>
    %c0_9 = arith.constant 0 : index
    %c0_10 = arith.constant 0 : index
    %c0_11 = arith.constant 0 : index
    %15 = vector.load %arg6[%c0_9, %c0_10, %c0_11] : memref<1x16x256xbf16, #tpu.memory_space<vmem>>, vector<1x16x256xbf16>
    %16 = vector.shape_cast %15 : vector<1x16x256xbf16> to vector<16x256xbf16>
    %17 = vector.shape_cast %14 : vector<16x256xbf16> to vector<1x16x256xbf16>
    tpu.vector_store %arg6[%c0_9, %c0_10, %c0_11], %17 {strides = array<i32>} : memref<1x16x256xbf16, #tpu.memory_space<vmem>>, vector<1x16x256xbf16>,
    %18 = vector.extract_strided_slice %7 {offsets = [32, 0], sizes = [64, 256], strides = [1, 1]} : vector<96x256xf32> to vector<64x256xf32>
    %19 = arith.truncf %18 : vector<64x256xf32> to vector<64x256xbf16>
    %c0_12 = arith.constant 0 : index
    %c0_13 = arith.constant 0 : index
    %c0_14 = arith.constant 0 : index
    %20 = vector.load %arg7[%c0_12, %c0_13, %c0_14] : memref<1x64x256xbf16, #tpu.memory_space<vmem>>, vector<1x64x256xbf16>
    %21 = vector.shape_cast %20 : vector<1x64x256xbf16> to vector<64x256xbf16>
    %22 = vector.shape_cast %19 : vector<64x256xbf16> to vector<1x64x256xbf16>
    tpu.vector_store %arg7[%c0_12, %c0_13, %c0_14], %22 {strides = array<i32>} : memref<1x64x256xbf16, #tpu.memory_space<vmem>>, vector<1x64x256xbf16>,
    return
  }
  func.func @transform_0(%arg0: i32, %arg1: i32) -> (i32, i32, i32) {
    %c0_i32 = arith.constant 0 : i32
    %c0_i32_0 = arith.constant 0 : i32
    return %arg0, %c0_i32, %arg1 : i32, i32, i32
  }
  func.func @transform_1(%arg0: i32, %arg1: i32) -> (i32, i32) {
    %c0_i32 = arith.constant 0 : i32
    %c0_i32_0 = arith.constant 0 : i32
    %c0_i32_1 = arith.constant 0 : i32
    return %c0_i32, %c0_i32_0 : i32, i32
  }
  func.func @transform_2(%arg0: i32, %arg1: i32) -> (i32, i32) {
    %c0_i32 = arith.constant 0 : i32
    %c0_i32_0 = arith.constant 0 : i32
    %c0_i32_1 = arith.constant 0 : i32
    return %c0_i32, %c0_i32_0 : i32, i32
  }
  func.func @transform_3(%arg0: i32, %arg1: i32) -> (i32, i32, i32) {
    %c0_i32 = arith.constant 0 : i32
    %c0_i32_0 = arith.constant 0 : i32
    return %arg0, %c0_i32, %arg1 : i32, i32, i32
  }
  func.func @transform_4(%arg0: i32, %arg1: i32) -> (i32, i32, i32) {
    %c0_i32 = arith.constant 0 : i32
    %c0_i32_0 = arith.constant 0 : i32
    return %arg0, %c0_i32, %arg1 : i32, i32, i32
  }
  func.func @transform_5(%arg0: i32, %arg1: i32) -> (i32, i32, i32) {
    %c0_i32 = arith.constant 0 : i32
    %c0_i32_0 = arith.constant 0 : i32
    return %arg0, %c0_i32, %arg1 : i32, i32, i32
  }
}

</mosaic_0001>

<llo_original>
// kernel: tpu_custom_call.1
$region0: #{tpu_custom_call.1}
  #allocation0 [shape = 'u32[]', space=smem, size = 0x4, offset = 0x4, fixed_abs, tag = 'smem constant byte address 0x4 - core index']
  #allocation1 [shape = 'u32[72,128]{1,0:T(1,128)}', space=vmem, size = 0x9000, scoped, tag = 'internal scratch']
  %s0 = inlined_call_operand.hbm [shape: f32[2,64,256], index: 0, kind: input, shape index: {}]
  %s1 = inlined_call_operand.vmem [shape: bf16[96,64], index: 1, kind: input, shape index: {}]
  %s2 = inlined_call_operand.vmem [shape: f32[96,1], index: 2, kind: input, shape index: {}]
  %s3 = inlined_call_operand.hbm [shape: bf16[2,16,256], index: 3, kind: output, shape index: {0}]
  %s4 = inlined_call_operand.hbm [shape: bf16[2,16,256], index: 4, kind: output, shape index: {1}]
  %s5 = inlined_call_operand.hbm [shape: bf16[2,64,256], index: 5, kind: output, shape index: {2}]
  %6 = xla_tuple %s3, %s4, %s5
  %s7 = sld [smem:[#allocation0]]
  $region65: #{tpu_custom_call.1} parent=0
    _
  %s9 = ssub.s32 1, %s7
  %s10 = scalar_select 0, %s9, %s7
  $region1: #{tpu_custom_call.1} parent=0
    #allocation2 [shape = 'u8[131072]{0}', space=vmem, size = 0x20000, scoped, tag = 'input window, operand 0']
    #allocation3 [shape = 's32[2]{0}', space=sflag, size = 0x8, scoped, tag = 'scoped memory for tpu_custom_call.1']
    #allocation4 [shape = 's32[2]{0}', space=sflag, size = 0x8, scoped, tag = 'scoped memory for tpu_custom_call.1']
    #allocation5 [shape = 'u8[16384]{0}', space=vmem, size = 0x4000, scoped, tag = 'output window, operand 0']
    #allocation6 [shape = 'u8[16384]{0}', space=vmem, size = 0x4000, scoped, tag = 'output window, operand 1']
    #allocation7 [shape = 's32[2]{0}', space=sflag, size = 0x8, scoped, tag = 'scoped memory for tpu_custom_call.1']
    #allocation8 [shape = 'u8[65536]{0}', space=vmem, size = 0x10000, scoped, tag = 'output window, operand 2']
    %11 = vsyncpa [#allocation3], 0
    %s12 = scalar_lea.sflag [#allocation3], 1
    %13 = vsyncpa %s12, 0
    %14 = vsyncpa [#allocation4], 0
    %s15 = scalar_lea.sflag [#allocation4], 1
    %16 = vsyncpa %s15, 0
    %17 = vsyncpa [#allocation7], 0
    %s18 = scalar_lea.sflag [#allocation7], 1
    %19 = vsyncpa %s18, 0
    loop: start=0, step=1, limit=4
    $region2: #{tpu_custom_call.1} parent=1 // loop_pre_header
      _
    $region3: #{tpu_custom_call.1} parent=1 // loop_header
      %s21 = sphi 0, %s25
      %p22 = scmp.ge.s32.totalorder %s21, 4
      %s28 = sphi 0, %s40
      %s29 = sphi 0, %s36
      %s30 = sphi 0, %s28
      %s31 = sphi 0, %s29
      %s32 = sphi 0, %s30
      %s33 = sphi 0, %s31
      %s45 = sphi 0, %s47
      %s48 = sphi 0, %s45
      %s49 = sphi 0, %s48
      %s65 = sphi 0, %s49
      %s69 = sphi 0, %s69
      %s71 = sphi 0, %s69
      %s72 = sphi 0, %s71
      %s86 = sphi 0, %s72
      %s90 = sphi 0, %s90
      %s92 = sphi 0, %s90
      %s93 = sphi 0, %s92
      %s107 = sphi 0, %s93
      %s115 = sphi 0, %s117
      %s118 = sphi 0, %s115
      %s119 = sphi 0, %s118
      %s135 = sphi 0, %s119
      %s143 = sphi 0, %s145
      %s146 = sphi 0, %s143
      %s147 = sphi 0, %s146
      %s163 = sphi 0, %s147
      %s171 = sphi 0, %s173
      %s174 = sphi 0, %s171
      %s175 = sphi 0, %s174
      %s191 = sphi 0, %s175
    $region4: #{tpu_custom_call.1} parent=1 // loop_header_branch
      %24 = sbr.rel (%p22) target = $region8
    $region5: #{tpu_custom_call.1} parent=1 // loop_body
      %s26 = ssub.s32 %s21, 1
      %s27 = ssub.s32 %s21, 2
      %s34 = sadd.s32 1, %s29
      %p35 = scmp.ge.s32.totalorder %s34, 1
      %s36 = scalar_select %p35, 0, %s34
      %s37 = sadd.s32 1, %s28
      %s38 = scalar_select %p35, %s37, %s28
      %p39 = scmp.ge.s32.totalorder %s38, 2
      %s40 = scalar_select %p39, 0, %s38
      %s41 = ssub.s32 %s28, %s40
      %s42 = ssub.s32 %s29, %s36
      %s43 = sor.u32 %s41, %s42
      %p44 = scmp.eq.s32.totalorder %s43, 0
      %s46 = sadd.s32 %s45, 1
      %s47 = scalar_select %p44, %s45, %s46
      %p50 = pneg %p44
      %p51 = scmp.eq.s32.totalorder %s21, 1
      %p52 = por %p50, %p51
      %p53 = scmp.ne.s32.totalorder %s45, %s48
      %p54 = scmp.eq.s32.totalorder %s21, 0
      %p55 = por %p53, %p54
      %p56 = scmp.ne.s32.totalorder %s45, %s48
      %p57 = scmp.eq.s32.totalorder %s26, 1
      %p58 = por %p56, %p57
      %p59 = scmp.ne.s32.totalorder %s48, %s49
      %p60 = scmp.eq.s32.totalorder %s26, 0
      %p61 = por %p59, %p60
      %p62 = scmp.ne.s32.totalorder %s48, %s49
      %p63 = scmp.eq.s32.totalorder %s27, 1
      %p64 = por %p62, %p63
      %p66 = scmp.ne.s32.totalorder %s49, %s65
      %p67 = scmp.eq.s32.totalorder %s27, 0
      %p68 = por %p66, %p67
      %s70 = sadd.s32 %s69, 1
      %p73 = scmp.eq.s32.totalorder %s21, 1
      %p74 = scmp.ne.s32.totalorder %s69, %s71
      %p75 = scmp.eq.s32.totalorder %s21, 0
      %p76 = por %p74, %p75
      %p77 = scmp.ne.s32.totalorder %s69, %s71
      %p78 = scmp.eq.s32.totalorder %s26, 1
      %p79 = por %p77, %p78
      %p80 = scmp.ne.s32.totalorder %s71, %s72
      %p81 = scmp.eq.s32.totalorder %s26, 0
      %p82 = por %p80, %p81
      %p83 = scmp.ne.s32.totalorder %s71, %s72
      %p84 = scmp.eq.s32.totalorder %s27, 1
      %p85 = por %p83, %p84
      %p87 = scmp.ne.s32.totalorder %s72, %s86
      %p88 = scmp.eq.s32.totalorder %s27, 0
      %p89 = por %p87, %p88
      %s91 = sadd.s32 %s90, 1
      %p94 = scmp.eq.s32.totalorder %s21, 1
      %p95 = scmp.ne.s32.totalorder %s90, %s92
      %p96 = scmp.eq.s32.totalorder %s21, 0
      %p97 = por %p95, %p96
      %p98 = scmp.ne.s32.totalorder %s90, %s92
      %p99 = scmp.eq.s32.totalorder %s26, 1
      %p100 = por %p98, %p99
      %p101 = scmp.ne.s32.totalorder %s92, %s93
      %p102 = scmp.eq.s32.totalorder %s26, 0
      %p103 = por %p101, %p102
      %p104 = scmp.ne.s32.totalorder %s92, %s93
      %p105 = scmp.eq.s32.totalorder %s27, 1
      %p106 = por %p104, %p105
      %p108 = scmp.ne.s32.totalorder %s93, %s107
      %p109 = scmp.eq.s32.totalorder %s27, 0
      %p110 = por %p108, %p109
      %s111 = ssub.s32 %s28, %s40
      %s112 = ssub.s32 %s29, %s36
      %s113 = sor.u32 %s111, %s112
      %p114 = scmp.eq.s32.totalorder %s113, 0
      %s116 = sadd.s32 %s115, 1
      %s117 = scalar_select %p114, %s115, %s116
      %p120 = pneg %p114
      %p121 = scmp.eq.s32.totalorder %s21, 1
      %p122 = por %p120, %p121
      %p123 = scmp.ne.s32.totalorder %s115, %s118
      %p124 = scmp.eq.s32.totalorder %s21, 0
      %p125 = por %p123, %p124
      %p126 = scmp.ne.s32.totalorder %s115, %s118
      %p127 = scmp.eq.s32.totalorder %s26, 1
      %p128 = por %p126, %p127
      %p129 = scmp.ne.s32.totalorder %s118, %s119
      %p130 = scmp.eq.s32.totalorder %s26, 0
      %p131 = por %p129, %p130
      %p132 = scmp.ne.s32.totalorder %s118, %s119
      %p133 = scmp.eq.s32.totalorder %s27, 1
      %p134 = por %p132, %p133
      %p136 = scmp.ne.s32.totalorder %s119, %s135
      %p137 = scmp.eq.s32.totalorder %s27, 0
      %p138 = por %p136, %p137
      %s139 = ssub.s32 %s28, %s40
      %s140 = ssub.s32 %s29, %s36
      %s141 = sor.u32 %s139, %s140
      %p142 = scmp.eq.s32.totalorder %s141, 0
      %s144 = sadd.s32 %s143, 1
      %s145 = scalar_select %p142, %s143, %s144
      %p148 = pneg %p142
      %p149 = scmp.eq.s32.totalorder %s21, 1
      %p150 = por %p148, %p149
      %p151 = scmp.ne.s32.totalorder %s143, %s146
      %p152 = scmp.eq.s32.totalorder %s21, 0
      %p153 = por %p151, %p152
      %p154 = scmp.ne.s32.totalorder %s143, %s146
      %p155 = scmp.eq.s32.totalorder %s26, 1
      %p156 = por %p154, %p155
      %p157 = scmp.ne.s32.totalorder %s146, %s147
      %p158 = scmp.eq.s32.totalorder %s26, 0
      %p159 = por %p157, %p158
      %p160 = scmp.ne.s32.totalorder %s146, %s147
      %p161 = scmp.eq.s32.totalorder %s27, 1
      %p162 = por %p160, %p161
      %p164 = scmp.ne.s32.totalorder %s147, %s163
      %p165 = scmp.eq.s32.totalorder %s27, 0
      %p166 = por %p164, %p165
      %s167 = ssub.s32 %s28, %s40
      %s168 = ssub.s32 %s29, %s36
      %s169 = sor.u32 %s167, %s168
      %p170 = scmp.eq.s32.totalorder %s169, 0
      %s172 = sadd.s32 %s171, 1
      %s173 = scalar_select %p170, %s171, %s172
      %p176 = pneg %p170
      %p177 = scmp.eq.s32.totalorder %s21, 1
      %p178 = por %p176, %p177
      %p179 = scmp.ne.s32.totalorder %s171, %s174
      %p180 = scmp.eq.s32.totalorder %s21, 0
      %p181 = por %p179, %p180
      %p182 = scmp.ne.s32.totalorder %s171, %s174
      %p183 = scmp.eq.s32.totalorder %s26, 1
      %p184 = por %p182, %p183
      %p185 = scmp.ne.s32.totalorder %s174, %s175
      %p186 = scmp.eq.s32.totalorder %s26, 0
      %p187 = por %p185, %p186
      %p188 = scmp.ne.s32.totalorder %s174, %s175
      %p189 = scmp.eq.s32.totalorder %s27, 1
      %p190 = por %p188, %p189
      %p192 = scmp.ne.s32.totalorder %s175, %s191
      %p193 = scmp.eq.s32.totalorder %s27, 0
      %p194 = por %p192, %p193
      %p195 = scmp.le.s32.totalorder 1, %s21
      %p196 = scmp.lt.s32.totalorder %s21, 3
      %p197 = pnand %p195, %p196
      %p198 = pneg %p197
      // Predicated region
      $region9: #{tpu_custom_call.1} parent=5 // pred_check
        _
      $region10: #{tpu_custom_call.1} parent=5 // pred_check_branch
        %200 = sbr.rel (%p197) target = $region12
      $region11: #{tpu_custom_call.1} parent=5 // pred_region
        %s201 = ssub.s32 %s21, 1
        // Predicated region
        $region13: #{tpu_custom_call.1} parent=11 // pred_check
          %p202 = pneg %p82
        $region14: #{tpu_custom_call.1} parent=11 // pred_check_branch
          %204 = sbr.rel (%p202) target = $region16
        $region15: #{tpu_custom_call.1} parent=11 // pred_region
          _
        $region16: #{tpu_custom_call.1} parent=11 // pred_fallthru
          _
        // Predicated region
        $region17: #{tpu_custom_call.1} parent=11 // pred_check
          %p205 = pneg %p103
        $region18: #{tpu_custom_call.1} parent=11 // pred_check_branch
          %207 = sbr.rel (%p205) target = $region20
        $region19: #{tpu_custom_call.1} parent=11 // pred_region
          _
        $region20: #{tpu_custom_call.1} parent=11 // pred_fallthru
          _
      $region12: #{tpu_custom_call.1} parent=5 // pred_fallthru
        _
      %p208 = scmp.lt.s32.totalorder %s21, 2
      // Predicated region
      $region21: #{tpu_custom_call.1} parent=5 // pred_check
        %p209 = pneg %p208
      $region22: #{tpu_custom_call.1} parent=5 // pred_check_branch
        %211 = sbr.rel (%p209) target = $region24
      $region23: #{tpu_custom_call.1} parent=5 // pred_region
        // Predicated region
        $region25: #{tpu_custom_call.1} parent=23 // pred_check
          %p212 = pneg %p55
        $region26: #{tpu_custom_call.1} parent=23 // pred_check_branch
          %214 = sbr.rel (%p212) target = $region28
        $region27: #{tpu_custom_call.1} parent=23 // pred_region
          %s215 = sand.u32 %s45, 1
          %s216 = scalar_lea.sflag [#allocation3], %s215
          %s217 = sand.u32 %s45, 1
          %s218 = smul.addr %s217, 128
          %s219 = scalar_lea.vmem [#allocation2], %s218
          %s220 = smul.u32 2, %s29
          %222 = vsyncadd %s216, 0
          %s223 = smul.addr %s28, 16
          %s224 = sadd.s32 %s220, %s223
          %s225 = smul.addr %s224, 8
          %s226 = scalar_lea.hbm %s0, %s225
          %s227 = sshll.u32 %s226, 4
          %s228 = int_to_ptr.hbm [resolvable:$true] %s227
          %s229 = sshll.u32 %s219, 4
          %s230 = int_to_ptr.vmem [resolvable:$true] %s229
          %235 = dma.hbm_to_vmem [thread:$0]  %s228, 2048, %s230, %s216, 256, 256, 16
        $region28: #{tpu_custom_call.1} parent=23 // pred_fallthru
          _
      $region24: #{tpu_custom_call.1} parent=5 // pred_fallthru
        _
      %p236 = scmp.le.s32.totalorder 1, %s21
      %p237 = scmp.lt.s32.totalorder %s21, 3
      %p238 = pnand %p236, %p237
      %p239 = pneg %p238
      // Predicated region
      $region29: #{tpu_custom_call.1} parent=5 // pred_check
        _
      $region30: #{tpu_custom_call.1} parent=5 // pred_check_branch
        %241 = sbr.rel (%p238) target = $region32
      $region31: #{tpu_custom_call.1} parent=5 // pred_region
        %s242 = ssub.s32 %s21, 1
        %s243 = sand.u32 %s48, 1
        %s244 = scalar_lea.sflag [#allocation3], %s243
        %s245 = sand.u32 %s48, 1
        %s246 = smul.addr %s245, 128
        %s247 = scalar_lea.vmem [#allocation2], %s246
        // Predicated region
        $region33: #{tpu_custom_call.1} parent=31 // pred_check
          %p248 = pneg %p61
        $region34: #{tpu_custom_call.1} parent=31 // pred_check_branch
          %250 = sbr.rel (%p248) target = $region36
        $region35: #{tpu_custom_call.1} parent=31 // pred_region
          %252 = dma.done %s244, 2048
        $region36: #{tpu_custom_call.1} parent=31 // pred_fallthru
          _
        %s253 = sand.u32 %s48, 1
        %s254 = scalar_lea.sflag [#allocation3], %s253
        %s255 = sand.u32 %s48, 1
        %s256 = smul.addr %s255, 128
        %s257 = scalar_lea.vmem [#allocation2], %s256
        %p258 = pneg %p61
        %p259 = pneg %p58
        %p260 = pneg %p82
        %p261 = pneg %p79
        %p262 = pneg %p103
        %p263 = pneg %p100
        %p264 = pneg %p131
        %p265 = pneg %p128
        %s266 = sand.u32 %s118, 1
        %s267 = scalar_lea.sflag [#allocation4], %s266
        %s268 = sand.u32 %s118, 1
        %s269 = smul.addr %s268, 16
        %s270 = scalar_lea.vmem [#allocation5], %s269
        %p271 = pneg %p159
        %p272 = pneg %p156
        %s273 = sand.u32 %s26, 1
        %s274 = scalar_lea.sflag [#allocation7], %s273
        %s275 = sand.u32 %s146, 1
        %s276 = smul.addr %s275, 16
        %s277 = scalar_lea.vmem [#allocation6], %s276
        %p278 = pneg %p187
        %p279 = pneg %p184
        %s280 = sand.u32 %s26, 1
        %s281 = scalar_lea.sflag [#allocation7], %s280
        %s282 = sand.u32 %s174, 1
        %s283 = smul.addr %s282, 64
        %s284 = scalar_lea.vmem [#allocation8], %s283
        %s285 = smul.u32 2, %s31
        %s286 = smul.u32 2, %s31
        %s287 = smul.u32 2, %s31
        %s288 = smul.u32 2, %s31
        %v290 = vld [vmem:[%s247] sm:$0xff]
        %v291 = vld [vmem:[%s247 + $0x8] sm:$0xff]
        %v292 = vld [vmem:[%s247 + $0x10] sm:$0xff]
        %v293 = vld [vmem:[%s247 + $0x18] sm:$0xff]
        %v294 = vld [vmem:[%s247 + $0x20] sm:$0xff]
        %v295 = vld [vmem:[%s247 + $0x28] sm:$0xff]
        %v296 = vld [vmem:[%s247 + $0x30] sm:$0xff]
        %v297 = vld [vmem:[%s247 + $0x38] sm:$0xff]
        %v298 = vld [vmem:[%s247 + $0x40] sm:$0xff]
        %v299 = vld [vmem:[%s247 + $0x48] sm:$0xff]
        %v300 = vld [vmem:[%s247 + $0x50] sm:$0xff]
        %v301 = vld [vmem:[%s247 + $0x58] sm:$0xff]
        %v302 = vld [vmem:[%s247 + $0x60] sm:$0xff]
        %v303 = vld [vmem:[%s247 + $0x68] sm:$0xff]
        %v304 = vld [vmem:[%s247 + $0x70] sm:$0xff]
        %v305 = vld [vmem:[%s247 + $0x78] sm:$0xff]
        %v306 = vpack.c.bf16 %v292, %v290
        %v307 = vpack.c.bf16 %v293, %v291
        %v308 = vpack.c.bf16 %v296, %v294
        %v309 = vpack.c.bf16 %v297, %v295
        %v310 = vpack.c.bf16 %v300, %v298
        %v311 = vpack.c.bf16 %v301, %v299
        %v312 = vpack.c.bf16 %v304, %v302
        %v313 = vpack.c.bf16 %v305, %v303
        %v314 = vld [vmem:[%s1] sm:$0xf]
        %v315 = vld [vmem:[%s1 + $0x4] sm:$0xf]
        %v316 = vld [vmem:[%s1 + $0x8] sm:$0xf]
        %v317 = vld [vmem:[%s1 + $0xc] sm:$0xf]
        %v318 = vld [vmem:[%s1 + $0x10] sm:$0xf]
        %v319 = vld [vmem:[%s1 + $0x14] sm:$0xf]
        %v320 = vld [vmem:[%s1 + $0x18] sm:$0xf]
        %v321 = vld [vmem:[%s1 + $0x1c] sm:$0xf]
        %v322 = vld [vmem:[%s1 + $0x20] sm:$0xf]
        %v323 = vld [vmem:[%s1 + $0x24] sm:$0xf]
        %v324 = vld [vmem:[%s1 + $0x28] sm:$0xf]
        %v325 = vld [vmem:[%s1 + $0x2c] sm:$0xf]
        %v326 = vld [vmem:[%s2] sm:$0xff]
        %v327 = vld [vmem:[%s2 + $0x8] sm:$0xff]
        %v328 = vld [vmem:[%s2 + $0x10] sm:$0xff]
        %v329 = vld [vmem:[%s2 + $0x18] sm:$0xff]
        %v330 = vld [vmem:[%s2 + $0x20] sm:$0xff]
        %v331 = vld [vmem:[%s2 + $0x28] sm:$0xff]
        %v332 = vld [vmem:[%s2 + $0x30] sm:$0xff]
        %v333 = vld [vmem:[%s2 + $0x38] sm:$0xff]
        %v334 = vld [vmem:[%s2 + $0x40] sm:$0xff]
        %v335 = vld [vmem:[%s2 + $0x48] sm:$0xff]
        %v336 = vld [vmem:[%s2 + $0x50] sm:$0xff]
        %v337 = vld [vmem:[%s2 + $0x58] sm:$0xff]
        %339 = vset.pattern.permute.xlu0 0
        %340 = vperm.xlu0 %339, %v326
        %v341 = vpop.permute.xlu0 %340
        %344 = vset.pattern.permute.xlu0 0
        %345 = vperm.xlu0 %344, %v327
        %v346 = vpop.permute.xlu0 %345
        %349 = vset.pattern.permute.xlu0 0
        %350 = vperm.xlu0 %349, %v328
        %v351 = vpop.permute.xlu0 %350
        %354 = vset.pattern.permute.xlu0 0
        %355 = vperm.xlu0 %354, %v329
        %v356 = vpop.permute.xlu0 %355
        %359 = vset.pattern.permute.xlu0 0
        %360 = vperm.xlu0 %359, %v330
        %v361 = vpop.permute.xlu0 %360
        %364 = vset.pattern.permute.xlu0 0
        %365 = vperm.xlu0 %364, %v331
        %v366 = vpop.permute.xlu0 %365
        %369 = vset.pattern.permute.xlu0 0
        %370 = vperm.xlu0 %369, %v332
        %v371 = vpop.permute.xlu0 %370
        %374 = vset.pattern.permute.xlu0 0
        %375 = vperm.xlu0 %374, %v333
        %v376 = vpop.permute.xlu0 %375
        %379 = vset.pattern.permute.xlu0 0
        %380 = vperm.xlu0 %379, %v334
        %v381 = vpop.permute.xlu0 %380
        %384 = vset.pattern.permute.xlu0 0
        %385 = vperm.xlu0 %384, %v335
        %v386 = vpop.permute.xlu0 %385
        %389 = vset.pattern.permute.xlu0 0
        %390 = vperm.xlu0 %389, %v336
        %v391 = vpop.permute.xlu0 %390
        %394 = vset.pattern.permute.xlu0 0
        %395 = vperm.xlu0 %394, %v337
        %v396 = vpop.permute.xlu0 %395
        %v410 = vunpack.c.l.b16 %v314
        %v411 = vunpack.c.l.b16 %v315
        %v412 = vunpack.c.l.b16 %v316
        %v413 = vunpack.c.l.b16 %v317
        %v414 = vunpack.c.l.b16 %v318
        %v415 = vunpack.c.l.b16 %v319
        %v416 = vunpack.c.l.b16 %v320
        %v417 = vunpack.c.l.b16 %v321
        %v418 = vunpack.c.l.b16 %v322
        %v419 = vunpack.c.l.b16 %v323
        %v420 = vunpack.c.l.b16 %v324
        %v421 = vunpack.c.l.b16 %v325
        %v422 = vpack.c.b16 %v411, %v410
        %v423 = vpack.c.b16 %v413, %v412
        %v424 = vpack.c.b16 %v415, %v414
        %v425 = vpack.c.b16 %v417, %v416
        %v426 = vpack.c.b16 %v419, %v418
        %v427 = vpack.c.b16 %v421, %v420
        %vm428 = vcmask 523264
        %v430 = vsel %vm428, %v422, 0
        %v433 = vsel %vm428, %v423, 0
        %v436 = vsel %vm428, %v424, 0
        %v439 = vsel %vm428, %v425, 0
        %v442 = vsel %vm428, %v426, 0
        %v445 = vsel %vm428, %v427, 0
        %447 = vmatpush.bf16.msra.mxu0 0
        %448 = vmatpush.bf16.msra.mxu0 0
        %449 = vmatpush.bf16.msra.mxu0 0
        %450 = vmatpush.bf16.msra.mxu0 0
        %451 = vmatpush.bf16.msra.mxu0 %v312
        %452 = vmatpush.bf16.msra.mxu0 %v310
        %453 = vmatpush.bf16.msra.mxu0 %v308
        %454 = vmatpush.bf16.msra.mxu0 %v306
        %455 = vmatmul.bf16.gmra.mxu0 %v430
        %v456 = vpop.f32.mrf.mxu0
        %v457 = vadd.f32 %v341, %v456
        %v458 = vpop.f32.mrf.mxu0
        %v459 = vadd.f32 %v346, %v458
        %460 = vmatmul.bf16.gmra.mxu0 %v433
        %v461 = vpop.f32.mrf.mxu0
        %v462 = vadd.f32 %v351, %v461
        %v463 = vpop.f32.mrf.mxu0
        %v464 = vadd.f32 %v356, %v463
        %465 = vmatmul.bf16.gmra.mxu0 %v436
        %v466 = vpop.f32.mrf.mxu0
        %v467 = vadd.f32 %v361, %v466
        %v468 = vpop.f32.mrf.mxu0
        %v469 = vadd.f32 %v366, %v468
        %470 = vmatmul.bf16.gmra.mxu0 %v439
        %v471 = vpop.f32.mrf.mxu0
        %v472 = vadd.f32 %v371, %v471
        %v473 = vpop.f32.mrf.mxu0
        %v474 = vadd.f32 %v376, %v473
        %475 = vmatmul.bf16.gmra.mxu0 %v442
        %v476 = vpop.f32.mrf.mxu0
        %v477 = vadd.f32 %v381, %v476
        %v478 = vpop.f32.mrf.mxu0
        %v479 = vadd.f32 %v386, %v478
        %480 = vmatmul.bf16.gmra.mxu0 %v445
        %v481 = vpop.f32.mrf.mxu0
        %v482 = vadd.f32 %v391, %v481
        %v483 = vpop.f32.mrf.mxu0
        %v484 = vadd.f32 %v396, %v483
        %485 = vdwg.mxu0
        %486 = vmatpush.bf16.msra.mxu0 0
        %487 = vmatpush.bf16.msra.mxu0 0
        %488 = vmatpush.bf16.msra.mxu0 0
        %489 = vmatpush.bf16.msra.mxu0 0
        %490 = vmatpush.bf16.msra.mxu0 %v313
        %491 = vmatpush.bf16.msra.mxu0 %v311
        %492 = vmatpush.bf16.msra.mxu0 %v309
        %493 = vmatpush.bf16.msra.mxu0 %v307
        %494 = vmatmul.bf16.gmra.mxu0 %v430
        %v495 = vpop.f32.mrf.mxu0
        %v496 = vadd.f32 %v341, %v495
        %v497 = vpop.f32.mrf.mxu0
        %v498 = vadd.f32 %v346, %v497
        %499 = vmatmul.bf16.gmra.mxu0 %v433
        %v500 = vpop.f32.mrf.mxu0
        %v501 = vadd.f32 %v351, %v500
        %v502 = vpop.f32.mrf.mxu0
        %v503 = vadd.f32 %v356, %v502
        %504 = vmatmul.bf16.gmra.mxu0 %v436
        %v505 = vpop.f32.mrf.mxu0
        %v506 = vadd.f32 %v361, %v505
        %v507 = vpop.f32.mrf.mxu0
        %v508 = vadd.f32 %v366, %v507
        %509 = vmatmul.bf16.gmra.mxu0 %v439
        %v510 = vpop.f32.mrf.mxu0
        %v511 = vadd.f32 %v371, %v510
        %v512 = vpop.f32.mrf.mxu0
        %v513 = vadd.f32 %v376, %v512
        %514 = vmatmul.bf16.gmra.mxu0 %v442
        %v515 = vpop.f32.mrf.mxu0
        %v516 = vadd.f32 %v381, %v515
        %v517 = vpop.f32.mrf.mxu0
        %v518 = vadd.f32 %v386, %v517
        %519 = vmatmul.bf16.gmra.mxu0 %v445
        %v520 = vpop.f32.mrf.mxu0
        %v521 = vadd.f32 %v391, %v520
        %v522 = vpop.f32.mrf.mxu0
        %v523 = vadd.f32 %v396, %v522
        %524 = vdwg.mxu0
        %v525 = vpack.c.bf16 %v496, %v457
        %v526 = vpack.c.bf16 %v498, %v459
        %527 = vst [vmem:[%s270] sm:$0xff] %v525
        %528 = vst [vmem:[%s270 + $0x8] sm:$0xff] %v526
        %v529 = vpack.c.bf16 %v501, %v462
        %v530 = vpack.c.bf16 %v503, %v464
        %531 = vst [vmem:[%s277] sm:$0xff] %v529
        %532 = vst [vmem:[%s277 + $0x8] sm:$0xff] %v530
        %v533 = vpack.c.bf16 %v506, %v467
        %v534 = vpack.c.bf16 %v508, %v469
        %v535 = vpack.c.bf16 %v511, %v472
        %v536 = vpack.c.bf16 %v513, %v474
        %v537 = vpack.c.bf16 %v516, %v477
        %v538 = vpack.c.bf16 %v518, %v479
        %v539 = vpack.c.bf16 %v521, %v482
        %v540 = vpack.c.bf16 %v523, %v484
        %541 = vst [vmem:[%s284] sm:$0xff] %v533
        %542 = vst [vmem:[%s284 + $0x8] sm:$0xff] %v534
        %543 = vst [vmem:[%s284 + $0x10] sm:$0xff] %v535
        %544 = vst [vmem:[%s284 + $0x18] sm:$0xff] %v536
        %545 = vst [vmem:[%s284 + $0x20] sm:$0xff] %v537
        %546 = vst [vmem:[%s284 + $0x28] sm:$0xff] %v538
        %547 = vst [vmem:[%s284 + $0x30] sm:$0xff] %v539
        %548 = vst [vmem:[%s284 + $0x38] sm:$0xff] %v540
        %s549 = sand.u32 %s118, 1
        %s550 = scalar_lea.sflag [#allocation4], %s549
        %s551 = sand.u32 %s118, 1
        %s552 = smul.addr %s551, 16
        %s553 = scalar_lea.vmem [#allocation5], %s552
        %s554 = sand.u32 %s26, 1
        %s555 = scalar_lea.sflag [#allocation7], %s554
        %s556 = sand.u32 %s146, 1
        %s557 = smul.addr %s556, 16
        %s558 = scalar_lea.vmem [#allocation6], %s557
        %s559 = sand.u32 %s26, 1
        %s560 = scalar_lea.sflag [#allocation7], %s559
        %s561 = sand.u32 %s174, 1
        %s562 = smul.addr %s561, 64
        %s563 = scalar_lea.vmem [#allocation8], %s562
        // Predicated region
        $region37: #{tpu_custom_call.1} parent=31 // pred_check
          %p564 = pneg %p128
        $region38: #{tpu_custom_call.1} parent=31 // pred_check_branch
          %566 = sbr.rel (%p564) target = $region40
        $region39: #{tpu_custom_call.1} parent=31 // pred_region
          %s567 = smul.u32 2, %s31
          %569 = vsyncadd %s550, 0
          %s570 = smul.addr %s30, 4
          %s571 = sadd.s32 %s567, %s570
          %s572 = smul.addr %s571, 4
          %s573 = scalar_lea.hbm %s3, %s572
          %s574 = sshll.u32 %s553, 4
          %s575 = int_to_ptr.vmem [resolvable:$true] %s574
          %s576 = sshll.u32 %s573, 4
          %s577 = int_to_ptr.hbm [resolvable:$true] %s576
          %582 = dma.vmem_to_hbm [thread:$0]  %s575, 256, %s577, %s550, 128, 128, 8
        $region40: #{tpu_custom_call.1} parent=31 // pred_fallthru
          _
        // Predicated region
        $region41: #{tpu_custom_call.1} parent=31 // pred_check
          %p583 = pneg %p156
        $region42: #{tpu_custom_call.1} parent=31 // pred_check_branch
          %585 = sbr.rel (%p583) target = $region44
        $region43: #{tpu_custom_call.1} parent=31 // pred_region
          %s586 = smul.u32 2, %s31
          %588 = vsyncadd %s555, 0
          %s589 = smul.addr %s30, 4
          %s590 = sadd.s32 %s586, %s589
          %s591 = smul.addr %s590, 4
          %s592 = scalar_lea.hbm %s4, %s591
          %s593 = sshll.u32 %s558, 4
          %s594 = int_to_ptr.vmem [resolvable:$true] %s593
          %s595 = sshll.u32 %s592, 4
          %s596 = int_to_ptr.hbm [resolvable:$true] %s595
          %601 = dma.vmem_to_hbm [thread:$0]  %s594, 256, %s596, %s555, 128, 128, 8
        $region44: #{tpu_custom_call.1} parent=31 // pred_fallthru
          _
        // Predicated region
        $region45: #{tpu_custom_call.1} parent=31 // pred_check
          %p602 = pneg %p184
        $region46: #{tpu_custom_call.1} parent=31 // pred_check_branch
          %604 = sbr.rel (%p602) target = $region48
        $region47: #{tpu_custom_call.1} parent=31 // pred_region
          %s605 = smul.u32 2, %s31
          %607 = vsyncadd %s560, 0
          %s608 = smul.addr %s30, 16
          %s609 = sadd.s32 %s605, %s608
          %s610 = smul.addr %s609, 4
          %s611 = scalar_lea.hbm %s5, %s610
          %s612 = sshll.u32 %s563, 4
          %s613 = int_to_ptr.vmem [resolvable:$true] %s612
          %s614 = sshll.u32 %s611, 4
          %s615 = int_to_ptr.hbm [resolvable:$true] %s614
          %620 = dma.vmem_to_hbm [thread:$0]  %s613, 1024, %s615, %s560, 128, 128, 8
        $region48: #{tpu_custom_call.1} parent=31 // pred_fallthru
          _
      $region32: #{tpu_custom_call.1} parent=5 // pred_fallthru
        _
      %p621 = scmp.le.s32.totalorder 2, %s21
      // Predicated region
      $region49: #{tpu_custom_call.1} parent=5 // pred_check
        %p622 = pneg %p621
      $region50: #{tpu_custom_call.1} parent=5 // pred_check_branch
        %624 = sbr.rel (%p622) target = $region52
      $region51: #{tpu_custom_call.1} parent=5 // pred_region
        %s625 = ssub.s32 %s21, 2
        // Predicated region
        $region53: #{tpu_custom_call.1} parent=51 // pred_check
          %p626 = pneg %p134
        $region54: #{tpu_custom_call.1} parent=51 // pred_check_branch
          %628 = sbr.rel (%p626) target = $region56
        $region55: #{tpu_custom_call.1} parent=51 // pred_region
          %s629 = sand.u32 %s119, 1
          %s630 = scalar_lea.sflag [#allocation4], %s629
          %s631 = sand.u32 %s119, 1
          %s632 = smul.addr %s631, 16
          %s633 = scalar_lea.vmem [#allocation5], %s632
          %635 = dma.done %s630, 256
        $region56: #{tpu_custom_call.1} parent=51 // pred_fallthru
          _
        // Predicated region
        $region57: #{tpu_custom_call.1} parent=51 // pred_check
          %p636 = pneg %p162
        $region58: #{tpu_custom_call.1} parent=51 // pred_check_branch
          %638 = sbr.rel (%p636) target = $region60
        $region59: #{tpu_custom_call.1} parent=51 // pred_region
          %s639 = sand.u32 %s27, 1
          %s640 = scalar_lea.sflag [#allocation7], %s639
          %s641 = sand.u32 %s147, 1
          %s642 = smul.addr %s641, 16
          %s643 = scalar_lea.vmem [#allocation6], %s642
          %645 = dma.done %s640, 256
        $region60: #{tpu_custom_call.1} parent=51 // pred_fallthru
          _
        // Predicated region
        $region61: #{tpu_custom_call.1} parent=51 // pred_check
          %p646 = pneg %p190
        $region62: #{tpu_custom_call.1} parent=51 // pred_check_branch
          %648 = sbr.rel (%p646) target = $region64
        $region63: #{tpu_custom_call.1} parent=51 // pred_region
          %s649 = sand.u32 %s27, 1
          %s650 = scalar_lea.sflag [#allocation7], %s649
          %s651 = sand.u32 %s175, 1
          %s652 = smul.addr %s651, 64
          %s653 = scalar_lea.vmem [#allocation8], %s652
          %655 = dma.done %s650, 1024
        $region64: #{tpu_custom_call.1} parent=51 // pred_fallthru
          _
      $region52: #{tpu_custom_call.1} parent=5 // pred_fallthru
        _
    $region6: #{tpu_custom_call.1} parent=1 // loop_footer
      %s25 = sadd.s32 1, %s21
    $region7: #{tpu_custom_call.1} parent=1 // loop_footer_branch
      %20 = sbr.rel target = $region3
    $region8: #{tpu_custom_call.1} parent=1 // loop_exit
      _
    %656 = vsyncpa [#allocation3], 1
    %s657 = scalar_lea.sflag [#allocation3], 1
    %658 = vsyncpa %s657, 1
    %659 = vsyncpa [#allocation4], 1
    %s660 = scalar_lea.sflag [#allocation4], 1
    %661 = vsyncpa %s660, 1
    %662 = vsyncpa [#allocation7], 1
    %s663 = scalar_lea.sflag [#allocation7], 1
    %664 = vsyncpa %s663, 1

</llo_original>
